<compile_context>
chip_gen: v7x
topology: tpu7x:2x2x1
jax: 0.10.0
libtpu: 0.0.40
codegen_flags: <defaults>
</compile_context>

<pallas_src>
import jax
import jax.numpy as jnp
from jax.experimental import pallas as pl
from jax.experimental.pallas import tpu as pltpu


def _round_up(x, m):
    return ((x + m - 1) // m) * m


def _grow_tile(base, cap, total):
    """Largest power-of-two multiple of `base` that is <= cap and divides `total`."""
    t = base
    while t * 2 <= min(cap, total) and total % (t * 2) == 0:
        t *= 2
    return t


# --------------------------------------------------------------------------
# Kernel 1: msg = D^{-1/2}_src * (X @ W), stored as bf16 for the MXU aggregation.
# Elementwise work (scaling) stays in f32 (v5e has no bf16 VPU path).
# --------------------------------------------------------------------------
def linear_scale_kernel(x_ref, w_ref, dis_ref, msg_ref):
    xw = jnp.dot(x_ref[...], w_ref[...], preferred_element_type=jnp.float32)
    msg_ref[...] = (dis_ref[...] * xw).astype(msg_ref.dtype)


# --------------------------------------------------------------------------
# Kernel 2: out[tile] = D^{-1/2}_dst * (A+I)[tile, :] @ msg + b
# grid = (dst-row tiles ["parallel"], src tiles ["arbitrary" reduction]).
# bf16 adjacency & messages feed the MXU; accumulation, scaling and bias in f32.
# --------------------------------------------------------------------------
def aggregate_kernel(adj_ref, msg_ref, dis_ref, b_ref, out_ref, acc_ref):
    @pl.when(pl.program_id(1) == 0)
    def _():
        acc_ref[...] = jnp.zeros_like(acc_ref)

    acc_ref[...] += jnp.dot(adj_ref[...], msg_ref[...],
                            preferred_element_type=jnp.float32)

    @pl.when(pl.program_id(1) == pl.num_programs(1) - 1)
    def _():
        out_ref[...] = (dis_ref[...] * acc_ref[...] + b_ref[...]).astype(out_ref.dtype)


def gcn_conv_pallas(x, edge_index, weight, bias):
    """x: (N, Fin) f32; edge_index: (2, E) int32; weight: (Fout, Fin); bias: (Fout,)."""
    n, f_in = x.shape
    f_out = weight.shape[0]

    # ---- tile / padding choices -------------------------------------------
    tm = 128 if n <= 128 else 256              # 256 fills v6e/v7x 256x256 MXU
    n_pad = _round_up(n, tm)
    tk = _grow_tile(tm, 2048, n_pad)           # big reduction blocks, fewer steps
    tm1 = _grow_tile(tm, 1024, n_pad)          # kernel-1 row tile
    f_in_pad = _round_up(f_in, 128)            # lane-dense matmul operands
    f_out_pad = _round_up(f_out, 128)          # lane-dense (unmasked) stores

    # ---- O(E) wrapper glue --------------------------------------------------
    # TODO(synk): the data-dependent edge_index -> dense-adjacency scatter has no
    # clean Pallas equivalent; it stays as XLA .at[].add glue.
    src = edge_index[0].astype(jnp.int32)
    dst = edge_index[1].astype(jnp.int32)
    diag = jnp.arange(n, dtype=jnp.int32)

    # dense A+I as adj[dst, src]; small integer counts are exact in bf16.
    adj = (jnp.zeros((n_pad, n_pad), jnp.bfloat16)
           .at[dst, src].add(1.0)
           .at[diag, diag].add(1.0))           # in-place diagonal, no eye add

    # deg / D^{-1/2} from edge_index in O(E); padded rows get dis = 0 (safe).
    deg = jnp.zeros((n,), jnp.float32).at[dst].add(1.0) + 1.0     # + self loop
    dis = jnp.where(deg > 0.0, jax.lax.rsqrt(deg), 0.0)
    dis_pad = jnp.zeros((n_pad, 1), jnp.float32).at[:n, 0].set(dis)

    x_pad = jnp.zeros((n_pad, f_in_pad), jnp.float32).at[:n, :f_in].set(
        x.astype(jnp.float32))
    w_pad = jnp.zeros((f_in_pad, f_out_pad), jnp.float32).at[:f_in, :f_out].set(
        weight.T.astype(jnp.float32))
    b_pad = jnp.zeros((1, f_out_pad), jnp.float32).at[0, :f_out].set(
        bias.astype(jnp.float32))

    vmem_limit = 32 * 1024 * 1024              # explicit: safe on v7x (64 MiB phys)

    # ---- kernel 1: msg = dis * (X @ W)  (computed once) --------------------
    msg = pl.pallas_call(
        linear_scale_kernel,
        out_shape=jax.ShapeDtypeStruct((n_pad, f_out_pad), jnp.bfloat16),
        grid=(n_pad // tm1,),
        in_specs=[
            pl.BlockSpec((tm1, f_in_pad), lambda i: (i, 0)),
            pl.BlockSpec((f_in_pad, f_out_pad), lambda i: (0, 0)),
            pl.BlockSpec((tm1, 1), lambda i: (i, 0)),
        ],
        out_specs=pl.BlockSpec((tm1, f_out_pad), lambda i: (i, 0)),
        compiler_params=pltpu.CompilerParams(
            dimension_semantics=("parallel",),
            vmem_limit_bytes=vmem_limit),
    )(x_pad, w_pad, dis_pad)

    # ---- kernel 2: row-tiled aggregation over the bf16 adjacency -----------
    out_pad = pl.pallas_call(
        aggregate_kernel,
        out_shape=jax.ShapeDtypeStruct((n_pad, f_out_pad), jnp.float32),
        grid=(n_pad // tm, n_pad // tk),
        in_specs=[
            pl.BlockSpec((tm, tk), lambda i, k: (i, k)),            # adj  (bf16)
            pl.BlockSpec((tk, f_out_pad), lambda i, k: (k, 0)),     # msg  (bf16)
            pl.BlockSpec((tm, 1), lambda i, k: (i, 0)),             # dis  (f32)
            pl.BlockSpec((1, f_out_pad), lambda i, k: (0, 0)),      # bias (f32)
        ],
        out_specs=pl.BlockSpec((tm, f_out_pad), lambda i, k: (i, 0)),
        scratch_shapes=[pltpu.VMEM((tm, f_out_pad), jnp.float32)],
        compiler_params=pltpu.CompilerParams(
            dimension_semantics=("parallel", "arbitrary"),
            vmem_limit_bytes=vmem_limit),
    )(adj, msg, dis_pad, b_pad)

    return out_pad[:n, :f_out]


# --------------------------------------------------------------------------
# Pure-JAX reference of the same math (true f32 semantics). quantize_msg=True
# models the bf16 rounding of the scaled messages used by the kernel.
# --------------------------------------------------------------------------
def reference_gcn(x, edge_index, weight, bias, quantize_msg=False):
    n = x.shape[0]
    src, dst = edge_index[0], edge_index[1]
    diag = jnp.arange(n)
    adj = (jnp.zeros((n, n), jnp.float32).at[dst, src].add(1.0)
           .at[diag, diag].add(1.0))
    deg = adj.sum(axis=1)
    dis = jnp.where(deg > 0, 1.0 / jnp.sqrt(deg), 0.0)
    xw = jnp.dot(x, weight.T, precision=jax.lax.Precision.HIGHEST)
    msg = dis[:, None] * xw
    if quantize_msg:
        msg = msg.astype(jnp.bfloat16).astype(jnp.float32)
    agg = jnp.dot(adj, msg, precision=jax.lax.Precision.HIGHEST)
    return dis[:, None] * agg + bias[None, :]


if __name__ == "__main__":
    # Small shapes consistent with ConvPool(input_dim=96, output_dim=64):
    # exercises node padding (300 -> 512), feature padding (96/64 -> 128),
    # the row-tiled grid and the K-reduction accumulator.
    N, F_IN, F_OUT, E = 300, 96, 64, 1200

    key = jax.random.PRNGKey(0)
    kx, ke1, ke2, kw, kb = jax.random.split(key, 5)

    x = jax.random.normal(kx, (N, F_IN), dtype=jnp.float32)

    # random directed edges, no self loops
    src = jax.random.randint(ke1, (E,), 0, N, dtype=jnp.int32)
    dst = (src + 1 + jax.random.randint(ke2, (E,), 0, N - 1, dtype=jnp.int32)) % N
    edge_index = jnp.stack([src, dst], axis=0)

    # glorot-ish weight, small random bias (exercises the bias path)
    scale = (6.0 / (F_IN + F_OUT)) ** 0.5
    weight = jax.random.uniform(kw, (F_OUT, F_IN), minval=-scale, maxval=scale,
                                dtype=jnp.float32)
    bias = 0.1 * jax.random.normal(kb, (F_OUT,), dtype=jnp.float32)

    out = gcn_conv_pallas(x, edge_index, weight, bias)
    out = jax.block_until_ready(out)
    assert out.shape == (N, F_OUT)

    # Tight check against a reference with the same bf16 message quantization
    # (validates the algorithm), looser check against the exact f32 semantics
    # (bf16 message rounding bounds the difference to ~1e-3 here).
    ref_q = reference_gcn(x, edge_index, weight, bias, quantize_msg=True)
    ref = reference_gcn(x, edge_index, weight, bias, quantize_msg=False)
    assert jnp.allclose(out, ref_q, atol=5e-3, rtol=5e-3)
    assert jnp.allclose(out, ref, atol=2e-2, rtol=2e-2)

    print("KERNEL_OK")
</pallas_src>

<mosaic_0001>
module attributes {stable_mosaic.version = 11 : i64} {
  func.func @linear_scale_kernel(%arg0: i32, %arg1: memref<512x128xf32, #tpu.memory_space<vmem>>, %arg2: memref<128x128xf32, #tpu.memory_space<vmem>>, %arg3: memref<512x1xf32, #tpu.memory_space<vmem>>, %arg4: memref<512x128xbf16, #tpu.memory_space<vmem>>) attributes {dimension_semantics = [#tpu.dimension_semantics<parallel>], iteration_bounds = array<i64: 1>, scalar_prefetch = 0 : i64, scratch_operands = 0 : i64, tpu.core_type = #tpu.core_type<tc>, window_params = [{transform_indices = @transform_0, window_bounds = array<i64: 512, 128>}, {pipeline_mode = #tpu.pipeline_mode<synchronous>, transform_indices = @transform_1, window_bounds = array<i64: 128, 128>}, {transform_indices = @transform_2, window_bounds = array<i64: 512, 1>}, {transform_indices = @transform_3, window_bounds = array<i64: 512, 128>}]} {
    %c0 = arith.constant 0 : index
    %c0_0 = arith.constant 0 : index
    %0 = vector.load %arg1[%c0, %c0_0] : memref<512x128xf32, #tpu.memory_space<vmem>>, vector<512x128xf32>
    %c0_1 = arith.constant 0 : index
    %c0_2 = arith.constant 0 : index
    %1 = vector.load %arg2[%c0_1, %c0_2] : memref<128x128xf32, #tpu.memory_space<vmem>>, vector<128x128xf32>
    %cst = arith.constant dense<0.000000e+00> : vector<512x128xf32>
    %2 = tpu.matmul %0, %1, %cst {dimension_numbers = #tpu.dot_dimension_numbers<[1], [0], [0], [1], [0, 0, 1, 1], [], []>} : vector<512x128xf32>, vector<128x128xf32>, vector<512x128xf32> -> vector<512x128xf32>
    %c0_3 = arith.constant 0 : index
    %c0_4 = arith.constant 0 : index
    %3 = vector.load %arg3[%c0_3, %c0_4] : memref<512x1xf32, #tpu.memory_space<vmem>>, vector<512x1xf32>
    %4 = vector.broadcast %3 : vector<512x1xf32> to vector<512x128xf32>
    %5 = arith.mulf %4, %2 : vector<512x128xf32>
    %6 = arith.truncf %5 : vector<512x128xf32> to vector<512x128xbf16>
    %c0_5 = arith.constant 0 : index
    %c0_6 = arith.constant 0 : index
    %7 = vector.load %arg4[%c0_5, %c0_6] : memref<512x128xbf16, #tpu.memory_space<vmem>>, vector<512x128xbf16>
    tpu.vector_store %arg4[%c0_5, %c0_6], %6 {strides = array<i32>} : memref<512x128xbf16, #tpu.memory_space<vmem>>, vector<512x128xbf16>,
    return
  }
  func.func @transform_0(%arg0: i32) -> (i32, i32) {
    %c0_i32 = arith.constant 0 : i32
    %c0_i32_0 = arith.constant 0 : i32
    return %arg0, %c0_i32 : i32, i32
  }
  func.func @transform_1(%arg0: i32) -> (i32, i32) {
    %c0_i32 = arith.constant 0 : i32
    %c0_i32_0 = arith.constant 0 : i32
    %c0_i32_1 = arith.constant 0 : i32
    return %c0_i32, %c0_i32_0 : i32, i32
  }
  func.func @transform_2(%arg0: i32) -> (i32, i32) {
    %c0_i32 = arith.constant 0 : i32
    %c0_i32_0 = arith.constant 0 : i32
    return %arg0, %c0_i32 : i32, i32
  }
  func.func @transform_3(%arg0: i32) -> (i32, i32) {
    %c0_i32 = arith.constant 0 : i32
    %c0_i32_0 = arith.constant 0 : i32
    return %arg0, %c0_i32 : i32, i32
  }
}

</mosaic_0001>

<llo_original>
// kernel: tpu_custom_call.1
$region0: #{tpu_custom_call.1}
  #allocation0 [shape = 'u32[]', space=smem, size = 0x4, offset = 0x4, fixed_abs, tag = 'smem constant byte address 0x4 - core index']
  #allocation1 [shape = 'u32[144,128]{1,0:T(1,128)}', space=vmem, size = 0x12000, scoped, tag = 'internal scratch']
  %s0 = inlined_call_operand.vmem [shape: f32[512,128], index: 0, kind: input, shape index: {}]
  %s1 = inlined_call_operand.hbm [shape: f32[128,128], index: 1, kind: input, shape index: {}]
  %s2 = inlined_call_operand.vmem [shape: f32[512,1], index: 2, kind: input, shape index: {}]
  %s3 = inlined_call_operand.hbm [shape: bf16[512,128], index: 3, kind: output, shape index: {}]
  %s4 = sld [smem:[#allocation0]]
  $region26: #{tpu_custom_call.1} parent=0
    _
  %s6 = ssub.s32 1, %s4
  %s7 = scalar_select 0, %s6, %s4
  $region1: #{tpu_custom_call.1} parent=0
    #allocation2 [shape = 'u8[65536]{0}', space=vmem, size = 0x10000, scoped, tag = 'input window, operand 1, single buffered']
    #allocation3 [shape = 's32[1]{0}', space=sflag, size = 0x4, scoped, tag = 'scoped memory for tpu_custom_call.1']
    #allocation4 [shape = 's32[1]{0}', space=sflag, size = 0x4, scoped, tag = 'scoped memory for tpu_custom_call.1']
    #allocation5 [shape = 'u8[131072]{0}', space=vmem, size = 0x20000, scoped, tag = 'output window, operand 0, single buffered']
    %8 = vsyncpa [#allocation3], 0
    %9 = vsyncpa [#allocation4], 0
    // Predicated region
    $region2: #{tpu_custom_call.1} parent=1 // pred_check
      _
    $region3: #{tpu_custom_call.1} parent=1 // pred_check_branch
      %11 = sbr.rel (0) target = $region5
    $region4: #{tpu_custom_call.1} parent=1 // pred_region
      _
    $region5: #{tpu_custom_call.1} parent=1 // pred_fallthru
      _
    // Predicated region
    $region6: #{tpu_custom_call.1} parent=1 // pred_check
      _
    $region7: #{tpu_custom_call.1} parent=1 // pred_check_branch
      %13 = sbr.rel (0) target = $region9
    $region8: #{tpu_custom_call.1} parent=1 // pred_region
      %s15 = ssub.s32 2048, 2048
      %16 = vsyncadd [#allocation3], %s15
      %s17 = sshll.u32 [#allocation2], 4
      %s18 = int_to_ptr.vmem [resolvable:$true] %s17
      %23 = dma.hbm_to_vmem [thread:$0]  %s1, 2048, %s18, [#allocation3], 128, 128, 8
    $region9: #{tpu_custom_call.1} parent=1 // pred_fallthru
      _
    // Predicated region
    $region10: #{tpu_custom_call.1} parent=1 // pred_check
      _
    $region11: #{tpu_custom_call.1} parent=1 // pred_check_branch
      %25 = sbr.rel (0) target = $region13
    $region12: #{tpu_custom_call.1} parent=1 // pred_region
      _
    $region13: #{tpu_custom_call.1} parent=1 // pred_fallthru
      _
    // Predicated region
    $region14: #{tpu_custom_call.1} parent=1 // pred_check
      _
    $region15: #{tpu_custom_call.1} parent=1 // pred_check_branch
      %27 = sbr.rel (0) target = $region17
    $region16: #{tpu_custom_call.1} parent=1 // pred_region
      %28 = dma.done [#allocation3], 2048
    $region17: #{tpu_custom_call.1} parent=1 // pred_fallthru
      _
    %v29 = vld [vmem:[%s0] sm:$0xff]
    %v30 = vld [vmem:[%s0 + $0x8] sm:$0xff]
    %v31 = vld [vmem:[%s0 + $0x10] sm:$0xff]
    %v32 = vld [vmem:[%s0 + $0x18] sm:$0xff]
    %v33 = vld [vmem:[%s0 + $0x20] sm:$0xff]
    %v34 = vld [vmem:[%s0 + $0x28] sm:$0xff]
    %v35 = vld [vmem:[%s0 + $0x30] sm:$0xff]
    %v36 = vld [vmem:[%s0 + $0x38] sm:$0xff]
    %v37 = vld [vmem:[%s0 + $0x40] sm:$0xff]
    %v38 = vld [vmem:[%s0 + $0x48] sm:$0xff]
    %v39 = vld [vmem:[%s0 + $0x50] sm:$0xff]
    %v40 = vld [vmem:[%s0 + $0x58] sm:$0xff]
    %v41 = vld [vmem:[%s0 + $0x60] sm:$0xff]
    %v42 = vld [vmem:[%s0 + $0x68] sm:$0xff]
    %v43 = vld [vmem:[%s0 + $0x70] sm:$0xff]
    %v44 = vld [vmem:[%s0 + $0x78] sm:$0xff]
    %v45 = vld [vmem:[%s0 + $0x80] sm:$0xff]
    %v46 = vld [vmem:[%s0 + $0x88] sm:$0xff]
    %v47 = vld [vmem:[%s0 + $0x90] sm:$0xff]
    %v48 = vld [vmem:[%s0 + $0x98] sm:$0xff]
    %v49 = vld [vmem:[%s0 + $0xa0] sm:$0xff]
    %v50 = vld [vmem:[%s0 + $0xa8] sm:$0xff]
    %v51 = vld [vmem:[%s0 + $0xb0] sm:$0xff]
    %v52 = vld [vmem:[%s0 + $0xb8] sm:$0xff]
    %v53 = vld [vmem:[%s0 + $0xc0] sm:$0xff]
    %v54 = vld [vmem:[%s0 + $0xc8] sm:$0xff]
    %v55 = vld [vmem:[%s0 + $0xd0] sm:$0xff]
    %v56 = vld [vmem:[%s0 + $0xd8] sm:$0xff]
    %v57 = vld [vmem:[%s0 + $0xe0] sm:$0xff]
    %v58 = vld [vmem:[%s0 + $0xe8] sm:$0xff]
    %v59 = vld [vmem:[%s0 + $0xf0] sm:$0xff]
    %v60 = vld [vmem:[%s0 + $0xf8] sm:$0xff]
    %v61 = vld [vmem:[%s0 + $0x100] sm:$0xff]
    %v62 = vld [vmem:[%s0 + $0x108] sm:$0xff]
    %v63 = vld [vmem:[%s0 + $0x110] sm:$0xff]
    %v64 = vld [vmem:[%s0 + $0x118] sm:$0xff]
    %v65 = vld [vmem:[%s0 + $0x120] sm:$0xff]
    %v66 = vld [vmem:[%s0 + $0x128] sm:$0xff]
    %v67 = vld [vmem:[%s0 + $0x130] sm:$0xff]
    %v68 = vld [vmem:[%s0 + $0x138] sm:$0xff]
    %v69 = vld [vmem:[%s0 + $0x140] sm:$0xff]
    %v70 = vld [vmem:[%s0 + $0x148] sm:$0xff]
    %v71 = vld [vmem:[%s0 + $0x150] sm:$0xff]
    %v72 = vld [vmem:[%s0 + $0x158] sm:$0xff]
    %v73 = vld [vmem:[%s0 + $0x160] sm:$0xff]
    %v74 = vld [vmem:[%s0 + $0x168] sm:$0xff]
    %v75 = vld [vmem:[%s0 + $0x170] sm:$0xff]
    %v76 = vld [vmem:[%s0 + $0x178] sm:$0xff]
    %v77 = vld [vmem:[%s0 + $0x180] sm:$0xff]
    %v78 = vld [vmem:[%s0 + $0x188] sm:$0xff]
    %v79 = vld [vmem:[%s0 + $0x190] sm:$0xff]
    %v80 = vld [vmem:[%s0 + $0x198] sm:$0xff]
    %v81 = vld [vmem:[%s0 + $0x1a0] sm:$0xff]
    %v82 = vld [vmem:[%s0 + $0x1a8] sm:$0xff]
    %v83 = vld [vmem:[%s0 + $0x1b0] sm:$0xff]
    %v84 = vld [vmem:[%s0 + $0x1b8] sm:$0xff]
    %v85 = vld [vmem:[%s0 + $0x1c0] sm:$0xff]
    %v86 = vld [vmem:[%s0 + $0x1c8] sm:$0xff]
    %v87 = vld [vmem:[%s0 + $0x1d0] sm:$0xff]
    %v88 = vld [vmem:[%s0 + $0x1d8] sm:$0xff]
    %v89 = vld [vmem:[%s0 + $0x1e0] sm:$0xff]
    %v90 = vld [vmem:[%s0 + $0x1e8] sm:$0xff]
    %v91 = vld [vmem:[%s0 + $0x1f0] sm:$0xff]
    %v92 = vld [vmem:[%s0 + $0x1f8] sm:$0xff]
    %v93 = vld [vmem:[#allocation2] sm:$0xff]
    %v94 = vld [vmem:[#allocation2 + $0x8] sm:$0xff]
    %v95 = vld [vmem:[#allocation2 + $0x10] sm:$0xff]
    %v96 = vld [vmem:[#allocation2 + $0x18] sm:$0xff]
    %v97 = vld [vmem:[#allocation2 + $0x20] sm:$0xff]
    %v98 = vld [vmem:[#allocation2 + $0x28] sm:$0xff]
    %v99 = vld [vmem:[#allocation2 + $0x30] sm:$0xff]
    %v100 = vld [vmem:[#allocation2 + $0x38] sm:$0xff]
    %v101 = vld [vmem:[#allocation2 + $0x40] sm:$0xff]
    %v102 = vld [vmem:[#allocation2 + $0x48] sm:$0xff]
    %v103 = vld [vmem:[#allocation2 + $0x50] sm:$0xff]
    %v104 = vld [vmem:[#allocation2 + $0x58] sm:$0xff]
    %v105 = vld [vmem:[#allocation2 + $0x60] sm:$0xff]
    %v106 = vld [vmem:[#allocation2 + $0x68] sm:$0xff]
    %v107 = vld [vmem:[#allocation2 + $0x70] sm:$0xff]
    %v108 = vld [vmem:[#allocation2 + $0x78] sm:$0xff]
    %109 = vmatprep.subr.mxu0 0.0
    %110 = vmatpush1.msra.mxu0 %v93
    %111 = vmatprep.subr.mxu0 0.0
    %112 = vmatpush1.msra.mxu0 %v94
    %113 = vmatprep.subr.mxu0 0.0
    %114 = vmatpush1.msra.mxu0 %v95
    %115 = vmatprep.subr.mxu0 0.0
    %116 = vmatpush1.msra.mxu0 %v96
    %117 = vmatprep.subr.mxu0 0.0
    %118 = vmatpush1.msra.mxu0 %v97
    %119 = vmatprep.subr.mxu0 0.0
    %120 = vmatpush1.msra.mxu0 %v98
    %121 = vmatprep.subr.mxu0 0.0
    %122 = vmatpush1.msra.mxu0 %v99
    %123 = vmatprep.subr.mxu0 0.0
    %124 = vmatpush1.msra.mxu0 %v100
    %125 = vmatprep.subr.mxu0 0.0
    %126 = vmatpush1.msra.mxu0 %v101
    %127 = vmatprep.subr.mxu0 0.0
    %128 = vmatpush1.msra.mxu0 %v102
    %129 = vmatprep.subr.mxu0 0.0
    %130 = vmatpush1.msra.mxu0 %v103
    %131 = vmatprep.subr.mxu0 0.0
    %132 = vmatpush1.msra.mxu0 %v104
    %133 = vmatprep.subr.mxu0 0.0
    %134 = vmatpush1.msra.mxu0 %v105
    %135 = vmatprep.subr.mxu0 0.0
    %136 = vmatpush1.msra.mxu0 %v106
    %137 = vmatprep.subr.mxu0 0.0
    %138 = vmatpush1.msra.mxu0 %v107
    %139 = vmatprep.subr.mxu0 0.0
    %140 = vmatpush1.msra.mxu0 %v108
    %141 = vmatprep.subr.mxu0 0.0
    %142 = vmatpush1.msra.mxu0 0.0
    %143 = vmatprep.subr.mxu0 0.0
    %144 = vmatpush1.msra.mxu0 0.0
    %145 = vmatprep.subr.mxu0 0.0
    %146 = vmatpush1.msra.mxu0 0.0
    %147 = vmatprep.subr.mxu0 0.0
    %148 = vmatpush1.msra.mxu0 0.0
    %149 = vmatprep.subr.mxu0 0.0
    %150 = vmatpush1.msra.mxu0 0.0
    %151 = vmatprep.subr.mxu0 0.0
    %152 = vmatpush1.msra.mxu0 0.0
    %153 = vmatprep.subr.mxu0 0.0
    %154 = vmatpush1.msra.mxu0 0.0
    %155 = vmatprep.subr.mxu0 0.0
    %156 = vmatpush1.msra.mxu0 0.0
    %157 = vmatprep.subr.mxu0 0.0
    %158 = vmatpush1.msra.mxu0 0.0
    %159 = vmatprep.subr.mxu0 0.0
    %160 = vmatpush1.msra.mxu0 0.0
    %161 = vmatprep.subr.mxu0 0.0
    %162 = vmatpush1.msra.mxu0 0.0
    %163 = vmatprep.subr.mxu0 0.0
    %164 = vmatpush1.msra.mxu0 0.0
    %165 = vmatprep.subr.mxu0 0.0
    %166 = vmatpush1.msra.mxu0 0.0
    %167 = vmatprep.subr.mxu0 0.0
    %168 = vmatpush1.msra.mxu0 0.0
    %169 = vmatprep.subr.mxu0 0.0
    %170 = vmatpush1.msra.mxu0 0.0
    %171 = vmatprep.subr.mxu0 0.0
    %172 = vmatpush1.msra.mxu0 0.0
    %173 = vmatprep.mubr.f32.mxu0 0.0
    %174 = vmatmul.mubr.f32.gmra.mrb[0].mxu0 %v29
    %v175 = vpop.f32.mrb[0].mxu0
    %v176 = vadd.f32 0.0, %v175
    %v177 = vpop.f32.mrb[0].mxu0
    %178 = vmatprep.mubr.f32.mxu0 0.0
    %179 = vmatmul.mubr.f32.gmra.mrb[0].mxu0 %v30
    %v180 = vpop.f32.mrb[0].mxu0
    %v181 = vadd.f32 0.0, %v180
    %v182 = vpop.f32.mrb[0].mxu0
    %183 = vmatprep.mubr.f32.mxu0 0.0
    %184 = vmatmul.mubr.f32.gmra.mrb[0].mxu0 %v31
    %v185 = vpop.f32.mrb[0].mxu0
    %v186 = vadd.f32 0.0, %v185
    %v187 = vpop.f32.mrb[0].mxu0
    %188 = vmatprep.mubr.f32.mxu0 0.0
    %189 = vmatmul.mubr.f32.gmra.mrb[0].mxu0 %v32
    %v190 = vpop.f32.mrb[0].mxu0
    %v191 = vadd.f32 0.0, %v190
    %v192 = vpop.f32.mrb[0].mxu0
    %193 = vmatprep.mubr.f32.mxu0 0.0
    %194 = vmatmul.mubr.f32.gmra.mrb[0].mxu0 %v33
    %v195 = vpop.f32.mrb[0].mxu0
    %v196 = vadd.f32 0.0, %v195
    %v197 = vpop.f32.mrb[0].mxu0
    %198 = vmatprep.mubr.f32.mxu0 0.0
    %199 = vmatmul.mubr.f32.gmra.mrb[0].mxu0 %v34
    %v200 = vpop.f32.mrb[0].mxu0
    %v201 = vadd.f32 0.0, %v200
    %v202 = vpop.f32.mrb[0].mxu0
    %203 = vmatprep.mubr.f32.mxu0 0.0
    %204 = vmatmul.mubr.f32.gmra.mrb[0].mxu0 %v35
    %v205 = vpop.f32.mrb[0].mxu0
    %v206 = vadd.f32 0.0, %v205
    %v207 = vpop.f32.mrb[0].mxu0
    %208 = vmatprep.mubr.f32.mxu0 0.0
    %209 = vmatmul.mubr.f32.gmra.mrb[0].mxu0 %v36
    %v210 = vpop.f32.mrb[0].mxu0
    %v211 = vadd.f32 0.0, %v210
    %v212 = vpop.f32.mrb[0].mxu0
    %213 = vmatprep.mubr.f32.mxu0 0.0
    %214 = vmatmul.mubr.f32.gmra.mrb[0].mxu0 %v37
    %v215 = vpop.f32.mrb[0].mxu0
    %v216 = vadd.f32 0.0, %v215
    %v217 = vpop.f32.mrb[0].mxu0
    %218 = vmatprep.mubr.f32.mxu0 0.0
    %219 = vmatmul.mubr.f32.gmra.mrb[0].mxu0 %v38
    %v220 = vpop.f32.mrb[0].mxu0
    %v221 = vadd.f32 0.0, %v220
    %v222 = vpop.f32.mrb[0].mxu0
    %223 = vmatprep.mubr.f32.mxu0 0.0
    %224 = vmatmul.mubr.f32.gmra.mrb[0].mxu0 %v39
    %v225 = vpop.f32.mrb[0].mxu0
    %v226 = vadd.f32 0.0, %v225
    %v227 = vpop.f32.mrb[0].mxu0
    %228 = vmatprep.mubr.f32.mxu0 0.0
    %229 = vmatmul.mubr.f32.gmra.mrb[0].mxu0 %v40
    %v230 = vpop.f32.mrb[0].mxu0
    %v231 = vadd.f32 0.0, %v230
    %v232 = vpop.f32.mrb[0].mxu0
    %233 = vmatprep.mubr.f32.mxu0 0.0
    %234 = vmatmul.mubr.f32.gmra.mrb[0].mxu0 %v41
    %v235 = vpop.f32.mrb[0].mxu0
    %v236 = vadd.f32 0.0, %v235
    %v237 = vpop.f32.mrb[0].mxu0
    %238 = vmatprep.mubr.f32.mxu0 0.0
    %239 = vmatmul.mubr.f32.gmra.mrb[0].mxu0 %v42
    %v240 = vpop.f32.mrb[0].mxu0
    %v241 = vadd.f32 0.0, %v240
    %v242 = vpop.f32.mrb[0].mxu0
    %243 = vmatprep.mubr.f32.mxu0 0.0
    %244 = vmatmul.mubr.f32.gmra.mrb[0].mxu0 %v43
    %v245 = vpop.f32.mrb[0].mxu0
    %v246 = vadd.f32 0.0, %v245
    %v247 = vpop.f32.mrb[0].mxu0
    %248 = vmatprep.mubr.f32.mxu0 0.0
    %249 = vmatmul.mubr.f32.gmra.mrb[0].mxu0 %v44
    %v250 = vpop.f32.mrb[0].mxu0
    %v251 = vadd.f32 0.0, %v250
    %v252 = vpop.f32.mrb[0].mxu0
    %253 = vmatprep.mubr.f32.mxu0 0.0
    %254 = vmatmul.mubr.f32.gmra.mrb[0].mxu0 %v45
    %v255 = vpop.f32.mrb[0].mxu0
    %v256 = vadd.f32 0.0, %v255
    %v257 = vpop.f32.mrb[0].mxu0
    %258 = vmatprep.mubr.f32.mxu0 0.0
    %259 = vmatmul.mubr.f32.gmra.mrb[0].mxu0 %v46
    %v260 = vpop.f32.mrb[0].mxu0
    %v261 = vadd.f32 0.0, %v260
    %v262 = vpop.f32.mrb[0].mxu0
    %263 = vmatprep.mubr.f32.mxu0 0.0
    %264 = vmatmul.mubr.f32.gmra.mrb[0].mxu0 %v47
    %v265 = vpop.f32.mrb[0].mxu0
    %v266 = vadd.f32 0.0, %v265
    %v267 = vpop.f32.mrb[0].mxu0
    %268 = vmatprep.mubr.f32.mxu0 0.0
    %269 = vmatmul.mubr.f32.gmra.mrb[0].mxu0 %v48
    %v270 = vpop.f32.mrb[0].mxu0
    %v271 = vadd.f32 0.0, %v270
    %v272 = vpop.f32.mrb[0].mxu0
    %273 = vmatprep.mubr.f32.mxu0 0.0
    %274 = vmatmul.mubr.f32.gmra.mrb[0].mxu0 %v49
    %v275 = vpop.f32.mrb[0].mxu0
    %v276 = vadd.f32 0.0, %v275
    %v277 = vpop.f32.mrb[0].mxu0
    %278 = vmatprep.mubr.f32.mxu0 0.0
    %279 = vmatmul.mubr.f32.gmra.mrb[0].mxu0 %v50
    %v280 = vpop.f32.mrb[0].mxu0
    %v281 = vadd.f32 0.0, %v280
    %v282 = vpop.f32.mrb[0].mxu0
    %283 = vmatprep.mubr.f32.mxu0 0.0
    %284 = vmatmul.mubr.f32.gmra.mrb[0].mxu0 %v51
    %v285 = vpop.f32.mrb[0].mxu0
    %v286 = vadd.f32 0.0, %v285
    %v287 = vpop.f32.mrb[0].mxu0
    %288 = vmatprep.mubr.f32.mxu0 0.0
    %289 = vmatmul.mubr.f32.gmra.mrb[0].mxu0 %v52
    %v290 = vpop.f32.mrb[0].mxu0
    %v291 = vadd.f32 0.0, %v290
    %v292 = vpop.f32.mrb[0].mxu0
    %293 = vmatprep.mubr.f32.mxu0 0.0
    %294 = vmatmul.mubr.f32.gmra.mrb[0].mxu0 %v53
    %v295 = vpop.f32.mrb[0].mxu0
    %v296 = vadd.f32 0.0, %v295
    %v297 = vpop.f32.mrb[0].mxu0
    %298 = vmatprep.mubr.f32.mxu0 0.0
    %299 = vmatmul.mubr.f32.gmra.mrb[0].mxu0 %v54
    %v300 = vpop.f32.mrb[0].mxu0
    %v301 = vadd.f32 0.0, %v300
    %v302 = vpop.f32.mrb[0].mxu0
    %303 = vmatprep.mubr.f32.mxu0 0.0
    %304 = vmatmul.mubr.f32.gmra.mrb[0].mxu0 %v55
    %v305 = vpop.f32.mrb[0].mxu0
    %v306 = vadd.f32 0.0, %v305
    %v307 = vpop.f32.mrb[0].mxu0
    %308 = vmatprep.mubr.f32.mxu0 0.0
    %309 = vmatmul.mubr.f32.gmra.mrb[0].mxu0 %v56
    %v310 = vpop.f32.mrb[0].mxu0
    %v311 = vadd.f32 0.0, %v310
    %v312 = vpop.f32.mrb[0].mxu0
    %313 = vmatprep.mubr.f32.mxu0 0.0
    %314 = vmatmul.mubr.f32.gmra.mrb[0].mxu0 %v57
    %v315 = vpop.f32.mrb[0].mxu0
    %v316 = vadd.f32 0.0, %v315
    %v317 = vpop.f32.mrb[0].mxu0
    %318 = vmatprep.mubr.f32.mxu0 0.0
    %319 = vmatmul.mubr.f32.gmra.mrb[0].mxu0 %v58
    %v320 = vpop.f32.mrb[0].mxu0
    %v321 = vadd.f32 0.0, %v320
    %v322 = vpop.f32.mrb[0].mxu0
    %323 = vmatprep.mubr.f32.mxu0 0.0
    %324 = vmatmul.mubr.f32.gmra.mrb[0].mxu0 %v59
    %v325 = vpop.f32.mrb[0].mxu0
    %v326 = vadd.f32 0.0, %v325
    %v327 = vpop.f32.mrb[0].mxu0
    %328 = vmatprep.mubr.f32.mxu0 0.0
    %329 = vmatmul.mubr.f32.gmra.mrb[0].mxu0 %v60
    %v330 = vpop.f32.mrb[0].mxu0
    %v331 = vadd.f32 0.0, %v330
    %v332 = vpop.f32.mrb[0].mxu0
    %333 = vmatprep.mubr.f32.mxu0 0.0
    %334 = vmatmul.mubr.f32.gmra.mrb[0].mxu0 %v61
    %v335 = vpop.f32.mrb[0].mxu0
    %v336 = vadd.f32 0.0, %v335
    %v337 = vpop.f32.mrb[0].mxu0
    %338 = vmatprep.mubr.f32.mxu0 0.0
    %339 = vmatmul.mubr.f32.gmra.mrb[0].mxu0 %v62
    %v340 = vpop.f32.mrb[0].mxu0
    %v341 = vadd.f32 0.0, %v340
    %v342 = vpop.f32.mrb[0].mxu0
    %343 = vmatprep.mubr.f32.mxu0 0.0
    %344 = vmatmul.mubr.f32.gmra.mrb[0].mxu0 %v63
    %v345 = vpop.f32.mrb[0].mxu0
    %v346 = vadd.f32 0.0, %v345
    %v347 = vpop.f32.mrb[0].mxu0
    %348 = vmatprep.mubr.f32.mxu0 0.0
    %349 = vmatmul.mubr.f32.gmra.mrb[0].mxu0 %v64
    %v350 = vpop.f32.mrb[0].mxu0
    %v351 = vadd.f32 0.0, %v350
    %v352 = vpop.f32.mrb[0].mxu0
    %353 = vmatprep.mubr.f32.mxu0 0.0
    %354 = vmatmul.mubr.f32.gmra.mrb[0].mxu0 %v65
    %v355 = vpop.f32.mrb[0].mxu0
    %v356 = vadd.f32 0.0, %v355
    %v357 = vpop.f32.mrb[0].mxu0
    %358 = vmatprep.mubr.f32.mxu0 0.0
    %359 = vmatmul.mubr.f32.gmra.mrb[0].mxu0 %v66
    %v360 = vpop.f32.mrb[0].mxu0
    %v361 = vadd.f32 0.0, %v360
    %v362 = vpop.f32.mrb[0].mxu0
    %363 = vmatprep.mubr.f32.mxu0 0.0
    %364 = vmatmul.mubr.f32.gmra.mrb[0].mxu0 %v67
    %v365 = vpop.f32.mrb[0].mxu0
    %v366 = vadd.f32 0.0, %v365
    %v367 = vpop.f32.mrb[0].mxu0
    %368 = vmatprep.mubr.f32.mxu0 0.0
    %369 = vmatmul.mubr.f32.gmra.mrb[0].mxu0 %v68
    %v370 = vpop.f32.mrb[0].mxu0
    %v371 = vadd.f32 0.0, %v370
    %v372 = vpop.f32.mrb[0].mxu0
    %373 = vmatprep.mubr.f32.mxu0 0.0
    %374 = vmatmul.mubr.f32.gmra.mrb[0].mxu0 %v69
    %v375 = vpop.f32.mrb[0].mxu0
    %v376 = vadd.f32 0.0, %v375
    %v377 = vpop.f32.mrb[0].mxu0
    %378 = vmatprep.mubr.f32.mxu0 0.0
    %379 = vmatmul.mubr.f32.gmra.mrb[0].mxu0 %v70
    %v380 = vpop.f32.mrb[0].mxu0
    %v381 = vadd.f32 0.0, %v380
    %v382 = vpop.f32.mrb[0].mxu0
    %383 = vmatprep.mubr.f32.mxu0 0.0
    %384 = vmatmul.mubr.f32.gmra.mrb[0].mxu0 %v71
    %v385 = vpop.f32.mrb[0].mxu0
    %v386 = vadd.f32 0.0, %v385
    %v387 = vpop.f32.mrb[0].mxu0
    %388 = vmatprep.mubr.f32.mxu0 0.0
    %389 = vmatmul.mubr.f32.gmra.mrb[0].mxu0 %v72
    %v390 = vpop.f32.mrb[0].mxu0
    %v391 = vadd.f32 0.0, %v390
    %v392 = vpop.f32.mrb[0].mxu0
    %393 = vmatprep.mubr.f32.mxu0 0.0
    %394 = vmatmul.mubr.f32.gmra.mrb[0].mxu0 %v73
    %v395 = vpop.f32.mrb[0].mxu0
    %v396 = vadd.f32 0.0, %v395
    %v397 = vpop.f32.mrb[0].mxu0
    %398 = vmatprep.mubr.f32.mxu0 0.0
    %399 = vmatmul.mubr.f32.gmra.mrb[0].mxu0 %v74
    %v400 = vpop.f32.mrb[0].mxu0
    %v401 = vadd.f32 0.0, %v400
    %v402 = vpop.f32.mrb[0].mxu0
    %403 = vmatprep.mubr.f32.mxu0 0.0
    %404 = vmatmul.mubr.f32.gmra.mrb[0].mxu0 %v75
    %v405 = vpop.f32.mrb[0].mxu0
    %v406 = vadd.f32 0.0, %v405
    %v407 = vpop.f32.mrb[0].mxu0
    %408 = vmatprep.mubr.f32.mxu0 0.0
    %409 = vmatmul.mubr.f32.gmra.mrb[0].mxu0 %v76
    %v410 = vpop.f32.mrb[0].mxu0
    %v411 = vadd.f32 0.0, %v410
    %v412 = vpop.f32.mrb[0].mxu0
    %413 = vmatprep.mubr.f32.mxu0 0.0
    %414 = vmatmul.mubr.f32.gmra.mrb[0].mxu0 %v77
    %v415 = vpop.f32.mrb[0].mxu0
    %v416 = vadd.f32 0.0, %v415
    %v417 = vpop.f32.mrb[0].mxu0
    %418 = vmatprep.mubr.f32.mxu0 0.0
    %419 = vmatmul.mubr.f32.gmra.mrb[0].mxu0 %v78
    %v420 = vpop.f32.mrb[0].mxu0
    %v421 = vadd.f32 0.0, %v420
    %v422 = vpop.f32.mrb[0].mxu0
    %423 = vmatprep.mubr.f32.mxu0 0.0
    %424 = vmatmul.mubr.f32.gmra.mrb[0].mxu0 %v79
    %v425 = vpop.f32.mrb[0].mxu0
    %v426 = vadd.f32 0.0, %v425
    %v427 = vpop.f32.mrb[0].mxu0
    %428 = vmatprep.mubr.f32.mxu0 0.0
    %429 = vmatmul.mubr.f32.gmra.mrb[0].mxu0 %v80
    %v430 = vpop.f32.mrb[0].mxu0
    %v431 = vadd.f32 0.0, %v430
    %v432 = vpop.f32.mrb[0].mxu0
    %433 = vmatprep.mubr.f32.mxu0 0.0
    %434 = vmatmul.mubr.f32.gmra.mrb[0].mxu0 %v81
    %v435 = vpop.f32.mrb[0].mxu0
    %v436 = vadd.f32 0.0, %v435
    %v437 = vpop.f32.mrb[0].mxu0
    %438 = vmatprep.mubr.f32.mxu0 0.0
    %439 = vmatmul.mubr.f32.gmra.mrb[0].mxu0 %v82
    %v440 = vpop.f32.mrb[0].mxu0
    %v441 = vadd.f32 0.0, %v440
    %v442 = vpop.f32.mrb[0].mxu0
    %443 = vmatprep.mubr.f32.mxu0 0.0
    %444 = vmatmul.mubr.f32.gmra.mrb[0].mxu0 %v83
    %v445 = vpop.f32.mrb[0].mxu0
    %v446 = vadd.f32 0.0, %v445
    %v447 = vpop.f32.mrb[0].mxu0
    %448 = vmatprep.mubr.f32.mxu0 0.0
    %449 = vmatmul.mubr.f32.gmra.mrb[0].mxu0 %v84
    %v450 = vpop.f32.mrb[0].mxu0
    %v451 = vadd.f32 0.0, %v450
    %v452 = vpop.f32.mrb[0].mxu0
    %453 = vmatprep.mubr.f32.mxu0 0.0
    %454 = vmatmul.mubr.f32.gmra.mrb[0].mxu0 %v85
    %v455 = vpop.f32.mrb[0].mxu0
    %v456 = vadd.f32 0.0, %v455
    %v457 = vpop.f32.mrb[0].mxu0
    %458 = vmatprep.mubr.f32.mxu0 0.0
    %459 = vmatmul.mubr.f32.gmra.mrb[0].mxu0 %v86
    %v460 = vpop.f32.mrb[0].mxu0
    %v461 = vadd.f32 0.0, %v460
    %v462 = vpop.f32.mrb[0].mxu0
    %463 = vmatprep.mubr.f32.mxu0 0.0
    %464 = vmatmul.mubr.f32.gmra.mrb[0].mxu0 %v87
    %v465 = vpop.f32.mrb[0].mxu0
    %v466 = vadd.f32 0.0, %v465
    %v467 = vpop.f32.mrb[0].mxu0
    %468 = vmatprep.mubr.f32.mxu0 0.0
    %469 = vmatmul.mubr.f32.gmra.mrb[0].mxu0 %v88
    %v470 = vpop.f32.mrb[0].mxu0
    %v471 = vadd.f32 0.0, %v470
    %v472 = vpop.f32.mrb[0].mxu0
    %473 = vmatprep.mubr.f32.mxu0 0.0
    %474 = vmatmul.mubr.f32.gmra.mrb[0].mxu0 %v89
    %v475 = vpop.f32.mrb[0].mxu0
    %v476 = vadd.f32 0.0, %v475
    %v477 = vpop.f32.mrb[0].mxu0
    %478 = vmatprep.mubr.f32.mxu0 0.0
    %479 = vmatmul.mubr.f32.gmra.mrb[0].mxu0 %v90
    %v480 = vpop.f32.mrb[0].mxu0
    %v481 = vadd.f32 0.0, %v480
    %v482 = vpop.f32.mrb[0].mxu0
    %483 = vmatprep.mubr.f32.mxu0 0.0
    %484 = vmatmul.mubr.f32.gmra.mrb[0].mxu0 %v91
    %v485 = vpop.f32.mrb[0].mxu0
    %v486 = vadd.f32 0.0, %v485
    %v487 = vpop.f32.mrb[0].mxu0
    %488 = vmatprep.mubr.f32.mxu0 0.0
    %489 = vmatmul.mubr.f32.gmra.mrb[0].mxu0 %v92
    %v490 = vpop.f32.mrb[0].mxu0
    %v491 = vadd.f32 0.0, %v490
    %v492 = vpop.f32.mrb[0].mxu0
    %493 = vdwg.mxu0
    %v494 = vld [vmem:[%s2] sm:$0xff]
    %v495 = vld [vmem:[%s2 + $0x8] sm:$0xff]
    %v496 = vld [vmem:[%s2 + $0x10] sm:$0xff]
    %v497 = vld [vmem:[%s2 + $0x18] sm:$0xff]
    %v498 = vld [vmem:[%s2 + $0x20] sm:$0xff]
    %v499 = vld [vmem:[%s2 + $0x28] sm:$0xff]
    %v500 = vld [vmem:[%s2 + $0x30] sm:$0xff]
    %v501 = vld [vmem:[%s2 + $0x38] sm:$0xff]
    %v502 = vld [vmem:[%s2 + $0x40] sm:$0xff]
    %v503 = vld [vmem:[%s2 + $0x48] sm:$0xff]
    %v504 = vld [vmem:[%s2 + $0x50] sm:$0xff]
    %v505 = vld [vmem:[%s2 + $0x58] sm:$0xff]
    %v506 = vld [vmem:[%s2 + $0x60] sm:$0xff]
    %v507 = vld [vmem:[%s2 + $0x68] sm:$0xff]
    %v508 = vld [vmem:[%s2 + $0x70] sm:$0xff]
    %v509 = vld [vmem:[%s2 + $0x78] sm:$0xff]
    %v510 = vld [vmem:[%s2 + $0x80] sm:$0xff]
    %v511 = vld [vmem:[%s2 + $0x88] sm:$0xff]
    %v512 = vld [vmem:[%s2 + $0x90] sm:$0xff]
    %v513 = vld [vmem:[%s2 + $0x98] sm:$0xff]
    %v514 = vld [vmem:[%s2 + $0xa0] sm:$0xff]
    %v515 = vld [vmem:[%s2 + $0xa8] sm:$0xff]
    %v516 = vld [vmem:[%s2 + $0xb0] sm:$0xff]
    %v517 = vld [vmem:[%s2 + $0xb8] sm:$0xff]
    %v518 = vld [vmem:[%s2 + $0xc0] sm:$0xff]
    %v519 = vld [vmem:[%s2 + $0xc8] sm:$0xff]
    %v520 = vld [vmem:[%s2 + $0xd0] sm:$0xff]
    %v521 = vld [vmem:[%s2 + $0xd8] sm:$0xff]
    %v522 = vld [vmem:[%s2 + $0xe0] sm:$0xff]
    %v523 = vld [vmem:[%s2 + $0xe8] sm:$0xff]
    %v524 = vld [vmem:[%s2 + $0xf0] sm:$0xff]
    %v525 = vld [vmem:[%s2 + $0xf8] sm:$0xff]
    %v526 = vld [vmem:[%s2 + $0x100] sm:$0xff]
    %v527 = vld [vmem:[%s2 + $0x108] sm:$0xff]
    %v528 = vld [vmem:[%s2 + $0x110] sm:$0xff]
    %v529 = vld [vmem:[%s2 + $0x118] sm:$0xff]
    %v530 = vld [vmem:[%s2 + $0x120] sm:$0xff]
    %v531 = vld [vmem:[%s2 + $0x128] sm:$0xff]
    %v532 = vld [vmem:[%s2 + $0x130] sm:$0xff]
    %v533 = vld [vmem:[%s2 + $0x138] sm:$0xff]
    %v534 = vld [vmem:[%s2 + $0x140] sm:$0xff]
    %v535 = vld [vmem:[%s2 + $0x148] sm:$0xff]
    %v536 = vld [vmem:[%s2 + $0x150] sm:$0xff]
    %v537 = vld [vmem:[%s2 + $0x158] sm:$0xff]
    %v538 = vld [vmem:[%s2 + $0x160] sm:$0xff]
    %v539 = vld [vmem:[%s2 + $0x168] sm:$0xff]
    %v540 = vld [vmem:[%s2 + $0x170] sm:$0xff]
    %v541 = vld [vmem:[%s2 + $0x178] sm:$0xff]
    %v542 = vld [vmem:[%s2 + $0x180] sm:$0xff]
    %v543 = vld [vmem:[%s2 + $0x188] sm:$0xff]
    %v544 = vld [vmem:[%s2 + $0x190] sm:$0xff]
    %v545 = vld [vmem:[%s2 + $0x198] sm:$0xff]
    %v546 = vld [vmem:[%s2 + $0x1a0] sm:$0xff]
    %v547 = vld [vmem:[%s2 + $0x1a8] sm:$0xff]
    %v548 = vld [vmem:[%s2 + $0x1b0] sm:$0xff]
    %v549 = vld [vmem:[%s2 + $0x1b8] sm:$0xff]
    %v550 = vld [vmem:[%s2 + $0x1c0] sm:$0xff]
    %v551 = vld [vmem:[%s2 + $0x1c8] sm:$0xff]
    %v552 = vld [vmem:[%s2 + $0x1d0] sm:$0xff]
    %v553 = vld [vmem:[%s2 + $0x1d8] sm:$0xff]
    %v554 = vld [vmem:[%s2 + $0x1e0] sm:$0xff]
    %v555 = vld [vmem:[%s2 + $0x1e8] sm:$0xff]
    %v556 = vld [vmem:[%s2 + $0x1f0] sm:$0xff]
    %v557 = vld [vmem:[%s2 + $0x1f8] sm:$0xff]
    %559 = vset.pattern.permute.xlu0 0
    %560 = vperm.xlu0 %559, %v494
    %v561 = vpop.permute.xlu0 %560
    %564 = vset.pattern.permute.xlu0 0
    %565 = vperm.xlu0 %564, %v495
    %v566 = vpop.permute.xlu0 %565
    %569 = vset.pattern.permute.xlu0 0
    %570 = vperm.xlu0 %569, %v496
    %v571 = vpop.permute.xlu0 %570
    %574 = vset.pattern.permute.xlu0 0
    %575 = vperm.xlu0 %574, %v497
    %v576 = vpop.permute.xlu0 %575
    %579 = vset.pattern.permute.xlu0 0
    %580 = vperm.xlu0 %579, %v498
    %v581 = vpop.permute.xlu0 %580
    %584 = vset.pattern.permute.xlu0 0
    %585 = vperm.xlu0 %584, %v499
    %v586 = vpop.permute.xlu0 %585
    %589 = vset.pattern.permute.xlu0 0
    %590 = vperm.xlu0 %589, %v500
    %v591 = vpop.permute.xlu0 %590
    %594 = vset.pattern.permute.xlu0 0
    %595 = vperm.xlu0 %594, %v501
    %v596 = vpop.permute.xlu0 %595
    %599 = vset.pattern.permute.xlu0 0
    %600 = vperm.xlu0 %599, %v502
    %v601 = vpop.permute.xlu0 %600
    %604 = vset.pattern.permute.xlu0 0
    %605 = vperm.xlu0 %604, %v503
    %v606 = vpop.permute.xlu0 %605
    %609 = vset.pattern.permute.xlu0 0
    %610 = vperm.xlu0 %609, %v504
    %v611 = vpop.permute.xlu0 %610
    %614 = vset.pattern.permute.xlu0 0
    %615 = vperm.xlu0 %614, %v505
    %v616 = vpop.permute.xlu0 %615
    %619 = vset.pattern.permute.xlu0 0
    %620 = vperm.xlu0 %619, %v506
    %v621 = vpop.permute.xlu0 %620
    %624 = vset.pattern.permute.xlu0 0
    %625 = vperm.xlu0 %624, %v507
    %v626 = vpop.permute.xlu0 %625
    %629 = vset.pattern.permute.xlu0 0
    %630 = vperm.xlu0 %629, %v508
    %v631 = vpop.permute.xlu0 %630
    %634 = vset.pattern.permute.xlu0 0
    %635 = vperm.xlu0 %634, %v509
    %v636 = vpop.permute.xlu0 %635
    %639 = vset.pattern.permute.xlu0 0
    %640 = vperm.xlu0 %639, %v510
    %v641 = vpop.permute.xlu0 %640
    %644 = vset.pattern.permute.xlu0 0
    %645 = vperm.xlu0 %644, %v511
    %v646 = vpop.permute.xlu0 %645
    %649 = vset.pattern.permute.xlu0 0
    %650 = vperm.xlu0 %649, %v512
    %v651 = vpop.permute.xlu0 %650
    %654 = vset.pattern.permute.xlu0 0
    %655 = vperm.xlu0 %654, %v513
    %v656 = vpop.permute.xlu0 %655
    %659 = vset.pattern.permute.xlu0 0
    %660 = vperm.xlu0 %659, %v514
    %v661 = vpop.permute.xlu0 %660
    %664 = vset.pattern.permute.xlu0 0
    %665 = vperm.xlu0 %664, %v515
    %v666 = vpop.permute.xlu0 %665
    %669 = vset.pattern.permute.xlu0 0
    %670 = vperm.xlu0 %669, %v516
    %v671 = vpop.permute.xlu0 %670
    %674 = vset.pattern.permute.xlu0 0
    %675 = vperm.xlu0 %674, %v517
    %v676 = vpop.permute.xlu0 %675
    %679 = vset.pattern.permute.xlu0 0
    %680 = vperm.xlu0 %679, %v518
    %v681 = vpop.permute.xlu0 %680
    %684 = vset.pattern.permute.xlu0 0
    %685 = vperm.xlu0 %684, %v519
    %v686 = vpop.permute.xlu0 %685
    %689 = vset.pattern.permute.xlu0 0
    %690 = vperm.xlu0 %689, %v520
    %v691 = vpop.permute.xlu0 %690
    %694 = vset.pattern.permute.xlu0 0
    %695 = vperm.xlu0 %694, %v521
    %v696 = vpop.permute.xlu0 %695
    %699 = vset.pattern.permute.xlu0 0
    %700 = vperm.xlu0 %699, %v522
    %v701 = vpop.permute.xlu0 %700
    %704 = vset.pattern.permute.xlu0 0
    %705 = vperm.xlu0 %704, %v523
    %v706 = vpop.permute.xlu0 %705
    %709 = vset.pattern.permute.xlu0 0
    %710 = vperm.xlu0 %709, %v524
    %v711 = vpop.permute.xlu0 %710
    %714 = vset.pattern.permute.xlu0 0
    %715 = vperm.xlu0 %714, %v525
    %v716 = vpop.permute.xlu0 %715
    %719 = vset.pattern.permute.xlu0 0
    %720 = vperm.xlu0 %719, %v526
    %v721 = vpop.permute.xlu0 %720
    %724 = vset.pattern.permute.xlu0 0
    %725 = vperm.xlu0 %724, %v527
    %v726 = vpop.permute.xlu0 %725
    %729 = vset.pattern.permute.xlu0 0
    %730 = vperm.xlu0 %729, %v528
    %v731 = vpop.permute.xlu0 %730
    %734 = vset.pattern.permute.xlu0 0
    %735 = vperm.xlu0 %734, %v529
    %v736 = vpop.permute.xlu0 %735
    %739 = vset.pattern.permute.xlu0 0
    %740 = vperm.xlu0 %739, %v530
    %v741 = vpop.permute.xlu0 %740
    %744 = vset.pattern.permute.xlu0 0
    %745 = vperm.xlu0 %744, %v531
    %v746 = vpop.permute.xlu0 %745
    %749 = vset.pattern.permute.xlu0 0
    %750 = vperm.xlu0 %749, %v532
    %v751 = vpop.permute.xlu0 %750
    %754 = vset.pattern.permute.xlu0 0
    %755 = vperm.xlu0 %754, %v533
    %v756 = vpop.permute.xlu0 %755
    %759 = vset.pattern.permute.xlu0 0
    %760 = vperm.xlu0 %759, %v534
    %v761 = vpop.permute.xlu0 %760
    %764 = vset.pattern.permute.xlu0 0
    %765 = vperm.xlu0 %764, %v535
    %v766 = vpop.permute.xlu0 %765
    %769 = vset.pattern.permute.xlu0 0
    %770 = vperm.xlu0 %769, %v536
    %v771 = vpop.permute.xlu0 %770
    %774 = vset.pattern.permute.xlu0 0
    %775 = vperm.xlu0 %774, %v537
    %v776 = vpop.permute.xlu0 %775
    %779 = vset.pattern.permute.xlu0 0
    %780 = vperm.xlu0 %779, %v538
    %v781 = vpop.permute.xlu0 %780
    %784 = vset.pattern.permute.xlu0 0
    %785 = vperm.xlu0 %784, %v539
    %v786 = vpop.permute.xlu0 %785
    %789 = vset.pattern.permute.xlu0 0
    %790 = vperm.xlu0 %789, %v540
    %v791 = vpop.permute.xlu0 %790
    %794 = vset.pattern.permute.xlu0 0
    %795 = vperm.xlu0 %794, %v541
    %v796 = vpop.permute.xlu0 %795
    %799 = vset.pattern.permute.xlu0 0
    %800 = vperm.xlu0 %799, %v542
    %v801 = vpop.permute.xlu0 %800
    %804 = vset.pattern.permute.xlu0 0
    %805 = vperm.xlu0 %804, %v543
    %v806 = vpop.permute.xlu0 %805
    %809 = vset.pattern.permute.xlu0 0
    %810 = vperm.xlu0 %809, %v544
    %v811 = vpop.permute.xlu0 %810
    %814 = vset.pattern.permute.xlu0 0
    %815 = vperm.xlu0 %814, %v545
    %v816 = vpop.permute.xlu0 %815
    %819 = vset.pattern.permute.xlu0 0
    %820 = vperm.xlu0 %819, %v546
    %v821 = vpop.permute.xlu0 %820
    %824 = vset.pattern.permute.xlu0 0
    %825 = vperm.xlu0 %824, %v547
    %v826 = vpop.permute.xlu0 %825
    %829 = vset.pattern.permute.xlu0 0
    %830 = vperm.xlu0 %829, %v548
    %v831 = vpop.permute.xlu0 %830
    %834 = vset.pattern.permute.xlu0 0
    %835 = vperm.xlu0 %834, %v549
    %v836 = vpop.permute.xlu0 %835
    %839 = vset.pattern.permute.xlu0 0
    %840 = vperm.xlu0 %839, %v550
    %v841 = vpop.permute.xlu0 %840
    %844 = vset.pattern.permute.xlu0 0
    %845 = vperm.xlu0 %844, %v551
    %v846 = vpop.permute.xlu0 %845
    %849 = vset.pattern.permute.xlu0 0
    %850 = vperm.xlu0 %849, %v552
    %v851 = vpop.permute.xlu0 %850
    %854 = vset.pattern.permute.xlu0 0
    %855 = vperm.xlu0 %854, %v553
    %v856 = vpop.permute.xlu0 %855
    %859 = vset.pattern.permute.xlu0 0
    %860 = vperm.xlu0 %859, %v554
    %v861 = vpop.permute.xlu0 %860
    %864 = vset.pattern.permute.xlu0 0
    %865 = vperm.xlu0 %864, %v555
    %v866 = vpop.permute.xlu0 %865
    %869 = vset.pattern.permute.xlu0 0
    %870 = vperm.xlu0 %869, %v556
    %v871 = vpop.permute.xlu0 %870
    %874 = vset.pattern.permute.xlu0 0
    %875 = vperm.xlu0 %874, %v557
    %v876 = vpop.permute.xlu0 %875
    %v878 = vmul.f32 %v561, %v176
    %v879 = vmul.f32 %v566, %v181
    %v880 = vmul.f32 %v571, %v186
    %v881 = vmul.f32 %v576, %v191
    %v882 = vmul.f32 %v581, %v196
    %v883 = vmul.f32 %v586, %v201
    %v884 = vmul.f32 %v591, %v206
    %v885 = vmul.f32 %v596, %v211
    %v886 = vmul.f32 %v601, %v216
    %v887 = vmul.f32 %v606, %v221
    %v888 = vmul.f32 %v611, %v226
    %v889 = vmul.f32 %v616, %v231
    %v890 = vmul.f32 %v621, %v236
    %v891 = vmul.f32 %v626, %v241
    %v892 = vmul.f32 %v631, %v246
    %v893 = vmul.f32 %v636, %v251
    %v894 = vmul.f32 %v641, %v256
    %v895 = vmul.f32 %v646, %v261
    %v896 = vmul.f32 %v651, %v266
    %v897 = vmul.f32 %v656, %v271
    %v898 = vmul.f32 %v661, %v276
    %v899 = vmul.f32 %v666, %v281
    %v900 = vmul.f32 %v671, %v286
    %v901 = vmul.f32 %v676, %v291
    %v902 = vmul.f32 %v681, %v296
    %v903 = vmul.f32 %v686, %v301
    %v904 = vmul.f32 %v691, %v306
    %v905 = vmul.f32 %v696, %v311
    %v906 = vmul.f32 %v701, %v316
    %v907 = vmul.f32 %v706, %v321
    %v908 = vmul.f32 %v711, %v326
    %v909 = vmul.f32 %v716, %v331
    %v910 = vmul.f32 %v721, %v336
    %v911 = vmul.f32 %v726, %v341
    %v912 = vmul.f32 %v731, %v346
    %v913 = vmul.f32 %v736, %v351
    %v914 = vmul.f32 %v741, %v356
    %v915 = vmul.f32 %v746, %v361
    %v916 = vmul.f32 %v751, %v366
    %v917 = vmul.f32 %v756, %v371
    %v918 = vmul.f32 %v761, %v376
    %v919 = vmul.f32 %v766, %v381
    %v920 = vmul.f32 %v771, %v386
    %v921 = vmul.f32 %v776, %v391
    %v922 = vmul.f32 %v781, %v396
    %v923 = vmul.f32 %v786, %v401
    %v924 = vmul.f32 %v791, %v406
    %v925 = vmul.f32 %v796, %v411
    %v926 = vmul.f32 %v801, %v416
    %v927 = vmul.f32 %v806, %v421
    %v928 = vmul.f32 %v811, %v426
    %v929 = vmul.f32 %v816, %v431
    %v930 = vmul.f32 %v821, %v436
    %v931 = vmul.f32 %v826, %v441
    %v932 = vmul.f32 %v831, %v446
    %v933 = vmul.f32 %v836, %v451
    %v934 = vmul.f32 %v841, %v456
    %v935 = vmul.f32 %v846, %v461
    %v936 = vmul.f32 %v851, %v466
    %v937 = vmul.f32 %v856, %v471
    %v938 = vmul.f32 %v861, %v476
    %v939 = vmul.f32 %v866, %v481
    %v940 = vmul.f32 %v871, %v486
    %v941 = vmul.f32 %v876, %v491
    %v942 = vpack.c.bf16 %v879, %v878
    %v943 = vpack.c.bf16 %v881, %v880
    %v944 = vpack.c.bf16 %v883, %v882
    %v945 = vpack.c.bf16 %v885, %v884
    %v946 = vpack.c.bf16 %v887, %v886
    %v947 = vpack.c.bf16 %v889, %v888
    %v948 = vpack.c.bf16 %v891, %v890
    %v949 = vpack.c.bf16 %v893, %v892
    %v950 = vpack.c.bf16 %v895, %v894
    %v951 = vpack.c.bf16 %v897, %v896
    %v952 = vpack.c.bf16 %v899, %v898
    %v953 = vpack.c.bf16 %v901, %v900
    %v954 = vpack.c.bf16 %v903, %v902
    %v955 = vpack.c.bf16 %v905, %v904
    %v956 = vpack.c.bf16 %v907, %v906
    %v957 = vpack.c.bf16 %v909, %v908
    %v958 = vpack.c.bf16 %v911, %v910
    %v959 = vpack.c.bf16 %v913, %v912
    %v960 = vpack.c.bf16 %v915, %v914
    %v961 = vpack.c.bf16 %v917, %v916
    %v962 = vpack.c.bf16 %v919, %v918
    %v963 = vpack.c.bf16 %v921, %v920
    %v964 = vpack.c.bf16 %v923, %v922
    %v965 = vpack.c.bf16 %v925, %v924
    %v966 = vpack.c.bf16 %v927, %v926
    %v967 = vpack.c.bf16 %v929, %v928
    %v968 = vpack.c.bf16 %v931, %v930
    %v969 = vpack.c.bf16 %v933, %v932
    %v970 = vpack.c.bf16 %v935, %v934
    %v971 = vpack.c.bf16 %v937, %v936
    %v972 = vpack.c.bf16 %v939, %v938
    %v973 = vpack.c.bf16 %v941, %v940
    %v1006 = vunpack.c.l.b16 %v942
    %v1007 = vunpack.c.h.b16 %v942
    %v1008 = vunpack.c.l.b16 %v943
    %v1009 = vunpack.c.h.b16 %v943
    %v1010 = vunpack.c.l.b16 %v944
    %v1011 = vunpack.c.h.b16 %v944
    %v1012 = vunpack.c.l.b16 %v945
    %v1013 = vunpack.c.h.b16 %v945
    %v1014 = vunpack.c.l.b16 %v946
    %v1015 = vunpack.c.h.b16 %v946
    %v1016 = vunpack.c.l.b16 %v947
    %v1017 = vunpack.c.h.b16 %v947
    %v1018 = vunpack.c.l.b16 %v948
    %v1019 = vunpack.c.h.b16 %v948
    %v1020 = vunpack.c.l.b16 %v949
    %v1021 = vunpack.c.h.b16 %v949
    %v1022 = vunpack.c.l.b16 %v950
    %v1023 = vunpack.c.h.b16 %v950
    %v1024 = vunpack.c.l.b16 %v951
    %v1025 = vunpack.c.h.b16 %v951
    %v1026 = vunpack.c.l.b16 %v952
    %v1027 = vunpack.c.h.b16 %v952
    %v1028 = vunpack.c.l.b16 %v953
    %v1029 = vunpack.c.h.b16 %v953
    %v1030 = vunpack.c.l.b16 %v954
    %v1031 = vunpack.c.h.b16 %v954
    %v1032 = vunpack.c.l.b16 %v955
    %v1033 = vunpack.c.h.b16 %v955
    %v1034 = vunpack.c.l.b16 %v956
    %v1035 = vunpack.c.h.b16 %v956
    %v1036 = vunpack.c.l.b16 %v957
    %v1037 = vunpack.c.h.b16 %v957
    %v1038 = vunpack.c.l.b16 %v958
    %v1039 = vunpack.c.h.b16 %v958
    %v1040 = vunpack.c.l.b16 %v959
    %v1041 = vunpack.c.h.b16 %v959
    %v1042 = vunpack.c.l.b16 %v960
    %v1043 = vunpack.c.h.b16 %v960
    %v1044 = vunpack.c.l.b16 %v961
    %v1045 = vunpack.c.h.b16 %v961
    %v1046 = vunpack.c.l.b16 %v962
    %v1047 = vunpack.c.h.b16 %v962
    %v1048 = vunpack.c.l.b16 %v963
    %v1049 = vunpack.c.h.b16 %v963
    %v1050 = vunpack.c.l.b16 %v964
    %v1051 = vunpack.c.h.b16 %v964
    %v1052 = vunpack.c.l.b16 %v965
    %v1053 = vunpack.c.h.b16 %v965
    %v1054 = vunpack.c.l.b16 %v966
    %v1055 = vunpack.c.h.b16 %v966
    %v1056 = vunpack.c.l.b16 %v967
    %v1057 = vunpack.c.h.b16 %v967
    %v1058 = vunpack.c.l.b16 %v968
    %v1059 = vunpack.c.h.b16 %v968
    %v1060 = vunpack.c.l.b16 %v969
    %v1061 = vunpack.c.h.b16 %v969
    %v1062 = vunpack.c.l.b16 %v970
    %v1063 = vunpack.c.h.b16 %v970
    %v1064 = vunpack.c.l.b16 %v971
    %v1065 = vunpack.c.h.b16 %v971
    %v1066 = vunpack.c.l.b16 %v972
    %v1067 = vunpack.c.h.b16 %v972
    %v1068 = vunpack.c.l.b16 %v973
    %v1069 = vunpack.c.h.b16 %v973
    %v1070 = vpack.c.b16 %v1006, %v1006
    %v1071 = vpack.c.b16 %v1007, %v1007
    %v1072 = vpack.c.b16 %v1008, %v1008
    %v1073 = vpack.c.b16 %v1009, %v1009
    %v1074 = vpack.c.b16 %v1010, %v1010
    %v1075 = vpack.c.b16 %v1011, %v1011
    %v1076 = vpack.c.b16 %v1012, %v1012
    %v1077 = vpack.c.b16 %v1013, %v1013
    %v1078 = vpack.c.b16 %v1014, %v1014
    %v1079 = vpack.c.b16 %v1015, %v1015
    %v1080 = vpack.c.b16 %v1016, %v1016
    %v1081 = vpack.c.b16 %v1017, %v1017
    %v1082 = vpack.c.b16 %v1018, %v1018
    %v1083 = vpack.c.b16 %v1019, %v1019
    %v1084 = vpack.c.b16 %v1020, %v1020
    %v1085 = vpack.c.b16 %v1021, %v1021
    %v1086 = vpack.c.b16 %v1022, %v1022
    %v1087 = vpack.c.b16 %v1023, %v1023
    %v1088 = vpack.c.b16 %v1024, %v1024
    %v1089 = vpack.c.b16 %v1025, %v1025
    %v1090 = vpack.c.b16 %v1026, %v1026
    %v1091 = vpack.c.b16 %v1027, %v1027
    %v1092 = vpack.c.b16 %v1028, %v1028
    %v1093 = vpack.c.b16 %v1029, %v1029
    %v1094 = vpack.c.b16 %v1030, %v1030
    %v1095 = vpack.c.b16 %v1031, %v1031
    %v1096 = vpack.c.b16 %v1032, %v1032
    %v1097 = vpack.c.b16 %v1033, %v1033
    %v1098 = vpack.c.b16 %v1034, %v1034
    %v1099 = vpack.c.b16 %v1035, %v1035
    %v1100 = vpack.c.b16 %v1036, %v1036
    %v1101 = vpack.c.b16 %v1037, %v1037
    %v1102 = vpack.c.b16 %v1038, %v1038
    %v1103 = vpack.c.b16 %v1039, %v1039
    %v1104 = vpack.c.b16 %v1040, %v1040
    %v1105 = vpack.c.b16 %v1041, %v1041
    %v1106 = vpack.c.b16 %v1042, %v1042
    %v1107 = vpack.c.b16 %v1043, %v1043
    %v1108 = vpack.c.b16 %v1044, %v1044
    %v1109 = vpack.c.b16 %v1045, %v1045
    %v1110 = vpack.c.b16 %v1046, %v1046
    %v1111 = vpack.c.b16 %v1047, %v1047
    %v1112 = vpack.c.b16 %v1048, %v1048
    %v1113 = vpack.c.b16 %v1049, %v1049
    %v1114 = vpack.c.b16 %v1050, %v1050
    %v1115 = vpack.c.b16 %v1051, %v1051
    %v1116 = vpack.c.b16 %v1052, %v1052
    %v1117 = vpack.c.b16 %v1053, %v1053
    %v1118 = vpack.c.b16 %v1054, %v1054
    %v1119 = vpack.c.b16 %v1055, %v1055
    %v1120 = vpack.c.b16 %v1056, %v1056
    %v1121 = vpack.c.b16 %v1057, %v1057
    %v1122 = vpack.c.b16 %v1058, %v1058
    %v1123 = vpack.c.b16 %v1059, %v1059
    %v1124 = vpack.c.b16 %v1060, %v1060
    %v1125 = vpack.c.b16 %v1061, %v1061
    %v1126 = vpack.c.b16 %v1062, %v1062
    %v1127 = vpack.c.b16 %v1063, %v1063
    %v1128 = vpack.c.b16 %v1064, %v1064
    %v1129 = vpack.c.b16 %v1065, %v1065
    %v1130 = vpack.c.b16 %v1066, %v1066
    %v1131 = vpack.c.b16 %v1067, %v1067
    %v1132 = vpack.c.b16 %v1068, %v1068
    %v1133 = vpack.c.b16 %v1069, %v1069
    %1198 = vst [vmem:[#allocation5] sm:$0xf] %v1070
    %1199 = vst [vmem:[#allocation5 + $0x4] sm:$0xf] %v1071
    %1200 = vst [vmem:[#allocation5 + $0x8] sm:$0xf] %v1072
    %1201 = vst [vmem:[#allocation5 + $0xc] sm:$0xf] %v1073
    %1202 = vst [vmem:[#allocation5 + $0x10] sm:$0xf] %v1074
    %1203 = vst [vmem:[#allocation5 + $0x14] sm:$0xf] %v1075
    %1204 = vst [vmem:[#allocation5 + $0x18] sm:$0xf] %v1076
    %1205 = vst [vmem:[#allocation5 + $0x1c] sm:$0xf] %v1077
    %1206 = vst [vmem:[#allocation5 + $0x20] sm:$0xf] %v1078
    %1207 = vst [vmem:[#allocation5 + $0x24] sm:$0xf] %v1079
    %1208 = vst [vmem:[#allocation5 + $0x28] sm:$0xf] %v1080
    %1209 = vst [vmem:[#allocation5 + $0x2c] sm:$0xf] %v1081
    %1210 = vst [vmem:[#allocation5 + $0x30] sm:$0xf] %v1082
    %1211 = vst [vmem:[#allocation5 + $0x34] sm:$0xf] %v1083
    %1212 = vst [vmem:[#allocation5 + $0x38] sm:$0xf] %v1084
    %1213 = vst [vmem:[#allocation5 + $0x3c] sm:$0xf] %v1085
    %1214 = vst [vmem:[#allocation5 + $0x40] sm:$0xf] %v1086
    %1215 = vst [vmem:[#allocation5 + $0x44] sm:$0xf] %v1087
    %1216 = vst [vmem:[#allocation5 + $0x48] sm:$0xf] %v1088
    %1217 = vst [vmem:[#allocation5 + $0x4c] sm:$0xf] %v1089
    %1218 = vst [vmem:[#allocation5 + $0x50] sm:$0xf] %v1090
    %1219 = vst [vmem:[#allocation5 + $0x54] sm:$0xf] %v1091
    %1220 = vst [vmem:[#allocation5 + $0x58] sm:$0xf] %v1092
    %1221 = vst [vmem:[#allocation5 + $0x5c] sm:$0xf] %v1093
    %1222 = vst [vmem:[#allocation5 + $0x60] sm:$0xf] %v1094
    %1223 = vst [vmem:[#allocation5 + $0x64] sm:$0xf] %v1095
    %1224 = vst [vmem:[#allocation5 + $0x68] sm:$0xf] %v1096
    %1225 = vst [vmem:[#allocation5 + $0x6c] sm:$0xf] %v1097
    %1226 = vst [vmem:[#allocation5 + $0x70] sm:$0xf] %v1098
    %1227 = vst [vmem:[#allocation5 + $0x74] sm:$0xf] %v1099
    %1228 = vst [vmem:[#allocation5 + $0x78] sm:$0xf] %v1100
    %1229 = vst [vmem:[#allocation5 + $0x7c] sm:$0xf] %v1101
    %1230 = vst [vmem:[#allocation5 + $0x80] sm:$0xf] %v1102
    %1231 = vst [vmem:[#allocation5 + $0x84] sm:$0xf] %v1103
    %1232 = vst [vmem:[#allocation5 + $0x88] sm:$0xf] %v1104
    %1233 = vst [vmem:[#allocation5 + $0x8c] sm:$0xf] %v1105
    %1234 = vst [vmem:[#allocation5 + $0x90] sm:$0xf] %v1106
    %1235 = vst [vmem:[#allocation5 + $0x94] sm:$0xf] %v1107
    %1236 = vst [vmem:[#allocation5 + $0x98] sm:$0xf] %v1108
    %1237 = vst [vmem:[#allocation5 + $0x9c] sm:$0xf] %v1109
    %1238 = vst [vmem:[#allocation5 + $0xa0] sm:$0xf] %v1110
    %1239 = vst [vmem:[#allocation5 + $0xa4] sm:$0xf] %v1111
    %1240 = vst [vmem:[#allocation5 + $0xa8] sm:$0xf] %v1112
    %1241 = vst [vmem:[#allocation5 + $0xac] sm:$0xf] %v1113
    %1242 = vst [vmem:[#allocation5 + $0xb0] sm:$0xf] %v1114
    %1243 = vst [vmem:[#allocation5 + $0xb4] sm:$0xf] %v1115
    %1244 = vst [vmem:[#allocation5 + $0xb8] sm:$0xf] %v1116
    %1245 = vst [vmem:[#allocation5 + $0xbc] sm:$0xf] %v1117
    %1246 = vst [vmem:[#allocation5 + $0xc0] sm:$0xf] %v1118
    %1247 = vst [vmem:[#allocation5 + $0xc4] sm:$0xf] %v1119
    %1248 = vst [vmem:[#allocation5 + $0xc8] sm:$0xf] %v1120
    %1249 = vst [vmem:[#allocation5 + $0xcc] sm:$0xf] %v1121
    %1250 = vst [vmem:[#allocation5 + $0xd0] sm:$0xf] %v1122
    %1251 = vst [vmem:[#allocation5 + $0xd4] sm:$0xf] %v1123
    %1252 = vst [vmem:[#allocation5 + $0xd8] sm:$0xf] %v1124
    %1253 = vst [vmem:[#allocation5 + $0xdc] sm:$0xf] %v1125
    %1254 = vst [vmem:[#allocation5 + $0xe0] sm:$0xf] %v1126
    %1255 = vst [vmem:[#allocation5 + $0xe4] sm:$0xf] %v1127
    %1256 = vst [vmem:[#allocation5 + $0xe8] sm:$0xf] %v1128
    %1257 = vst [vmem:[#allocation5 + $0xec] sm:$0xf] %v1129
    %1258 = vst [vmem:[#allocation5 + $0xf0] sm:$0xf] %v1130
    %1259 = vst [vmem:[#allocation5 + $0xf4] sm:$0xf] %v1131
    %1260 = vst [vmem:[#allocation5 + $0xf8] sm:$0xf] %v1132
    %1261 = vst [vmem:[#allocation5 + $0xfc] sm:$0xf] %v1133
    // Predicated region
    $region18: #{tpu_custom_call.1} parent=1 // pred_check
      _
    $region19: #{tpu_custom_call.1} parent=1 // pred_check_branch
      %1263 = sbr.rel (0) target = $region21
    $region20: #{tpu_custom_call.1} parent=1 // pred_region
      %s1265 = ssub.s32 4096, 4096
      %1266 = vsyncadd [#allocation4], %s1265
      %s1267 = sshll.u32 [#allocation5], 4
      %s1268 = int_to_ptr.vmem [resolvable:$true] %s1267
      %1273 = dma.vmem_to_hbm [thread:$0]  %s1268, 4096, %s3, [#allocation4], 64, 64, 4
    $region21: #{tpu_custom_call.1} parent=1 // pred_fallthru
      _
    // Predicated region
    $region22: #{tpu_custom_call.1} parent=1 // pred_check
      _
    $region23: #{tpu_custom_call.1} parent=1 // pred_check_branch
      %1275 = sbr.rel (0) target = $region25
    $region24: #{tpu_custom_call.1} parent=1 // pred_region
      %1276 = dma.done [#allocation4], 4096
    $region25: #{tpu_custom_call.1} parent=1 // pred_fallthru
      _
    %1277 = vsyncpa [#allocation3], 1
    %1278 = vsyncpa [#allocation4], 1

</llo_original>
